<compile_context>
chip_gen: v7x
topology: tpu7x:2x2x1
jax: 0.10.0
libtpu: 0.0.40
codegen_flags: <defaults>
</compile_context>

<pallas_src>
import functools

import jax
import jax.numpy as jnp
from jax.experimental import pallas as pl
from jax.experimental.pallas import tpu as pltpu


def _round_up(n: int, m: int) -> int:
    return ((n + m - 1) // m) * m


def _nn_eval_kernel(x_ref, w_ref, b_ref, y_ref, *out_refs, emit_logits: bool):
    """Fused classifier forward + evaluate() hot path for one batch tile."""
    if emit_logits:
        logits_ref, pred_ref, correct_ref = out_refs
    else:
        pred_ref, correct_ref = out_refs

    # ---- forward stand-in: bf16 x @ bf16 W on the MXU, f32 accumulation ----
    logits = jnp.dot(x_ref[...], w_ref[...],
                     preferred_element_type=jnp.float32) + b_ref[...]   # (TB, Cp) f32

    if emit_logits:
        logits_ref[...] = logits

    # ---- evaluate(): argmax(dim=1), first-index tie-break (torch.argmax) ----
    # Padded class columns carry a -1e30 bias so they can never win the argmax.
    # (Two XLU reductions kept for exact torch tie-break semantics.)
    c_pad = logits.shape[1]
    col = jax.lax.broadcasted_iota(jnp.int32, logits.shape, 1)          # (TB, Cp)
    row_max = jnp.max(logits, axis=1, keepdims=True)                    # (TB, 1)
    cand = jnp.where(logits == row_max, col, c_pad)                     # (TB, Cp)
    pred = jnp.min(cand, axis=1).astype(jnp.int32)                      # (TB,) lane-major
    pred_row = pred.reshape(1, 1, -1)                                   # (1, 1, TB) lane-dense
    pred_ref[...] = pred_row

    # ---- per-tile correct count (reduced across tiles in the wrapper) ----
    matches = (pred_row == y_ref[...]).astype(jnp.int32)                # (1, 1, TB)
    correct_ref[...] = jnp.sum(matches, axis=-1, keepdims=True)         # (1, 1, 1)


def nn_evaluate_batch(x, w, b, y, *, tile_b=None, return_logits=False):
    """Returns (logits [B,C] f32 or None, preds [B] i32, correct_count i32 scalar)."""
    B, D = x.shape
    C = w.shape[1]

    # Lane-dense class axis: pad classifier columns up to a multiple of 128.
    C_pad = _round_up(C, 128)

    # Batch tile: 256 matches the v6e/v7x 256-wide MXU, 128 matches v5e; small
    # batches run as a single 8-row-aligned tile.
    if tile_b is None:
        tile_b = 256 if B >= 256 else (128 if B >= 128 else _round_up(B, 8))
    B_pad = _round_up(B, tile_b)
    n_tiles = B_pad // tile_b

    # bf16 activations / weights (halves DMA traffic); f32 accumulation in-kernel.
    x_p = jnp.zeros((B_pad, D), jnp.bfloat16).at[:B].set(x.astype(jnp.bfloat16))
    w_p = jnp.zeros((D, C_pad), jnp.bfloat16).at[:, :C].set(w.astype(jnp.bfloat16))
    # Padded class columns get a huge negative bias so argmax never selects them.
    b_p = jnp.full((1, C_pad), -1e30, jnp.float32).at[0, :C].set(b.astype(jnp.float32))
    # Labels as a lane-dense (n_tiles, 1, tile_b) slab; padded rows get -1 (never match).
    y_p = (jnp.full((B_pad,), -1, jnp.int32).at[:B].set(y.astype(jnp.int32))
           .reshape(n_tiles, 1, tile_b))

    in_specs = [
        pl.BlockSpec((tile_b, D), lambda i: (i, 0)),          # x: batch-tiled
        pl.BlockSpec((D, C_pad), lambda i: (0, 0)),           # W: resident across grid
        pl.BlockSpec((1, C_pad), lambda i: (0, 0)),           # bias: resident
        pl.BlockSpec((1, 1, tile_b), lambda i: (i, 0, 0)),    # labels: lane-dense
    ]

    out_shapes, out_specs = [], []
    if return_logits:
        out_shapes.append(jax.ShapeDtypeStruct((B_pad, C_pad), jnp.float32))
        out_specs.append(pl.BlockSpec((tile_b, C_pad), lambda i: (i, 0)))
    out_shapes.append(jax.ShapeDtypeStruct((n_tiles, 1, tile_b), jnp.int32))  # preds
    out_specs.append(pl.BlockSpec((1, 1, tile_b), lambda i: (i, 0, 0)))
    out_shapes.append(jax.ShapeDtypeStruct((n_tiles, 1, 1), jnp.int32))       # per-tile counts
    out_specs.append(pl.BlockSpec((1, 1, 1), lambda i: (i, 0, 0)))

    outs = pl.pallas_call(
        functools.partial(_nn_eval_kernel, emit_logits=return_logits),
        grid=(n_tiles,),
        in_specs=in_specs,
        out_specs=tuple(out_specs),
        out_shape=tuple(out_shapes),
        compiler_params=pltpu.CompilerParams(
            dimension_semantics=("parallel",),   # batch tiles are independent
        ),
    )(x_p, w_p, b_p, y_p)

    if return_logits:
        logits_pad, preds_pad, counts = outs
        logits = logits_pad[:B, :C]
    else:
        preds_pad, counts = outs
        logits = None
    preds = preds_pad.reshape(B_pad)[:B]
    correct = jnp.sum(counts)
    return logits, preds, correct


if __name__ == "__main__":
    # Small shapes consistent with the module: NN(num_classes=4) classifier head.
    B, D, C = 8, 32, 4  # batch, feature dim, num_classes

    key = jax.random.PRNGKey(0)
    kx, kw, kb, ky = jax.random.split(key, 4)

    x = jax.random.normal(kx, (B, D), dtype=jnp.float32)
    bound = 1.0 / (D ** 0.5)
    w = jax.random.uniform(kw, (D, C), dtype=jnp.float32, minval=-bound, maxval=bound)
    b = jax.random.uniform(kb, (C,), dtype=jnp.float32, minval=-bound, maxval=bound)
    y = jax.random.randint(ky, (B,), 0, C, dtype=jnp.int32)

    # Full path (logits + evaluate outputs).
    logits, preds, correct = nn_evaluate_batch(x, w, b, y, return_logits=True)
    # Evaluate-only path (no logits HBM writeback — the common evaluate() case).
    _, preds_eval, correct_eval = nn_evaluate_batch(x, w, b, y, return_logits=False)
    jax.block_until_ready((logits, preds, correct, preds_eval, correct_eval))

    # Pure-JAX reference (same bf16-in / f32-accumulate math as the kernel).
    ref_logits = jnp.dot(x.astype(jnp.bfloat16), w.astype(jnp.bfloat16),
                         preferred_element_type=jnp.float32) + b
    ref_preds = jnp.argmax(ref_logits, axis=1).astype(jnp.int32)
    ref_correct = jnp.sum((ref_preds == y).astype(jnp.int32))

    assert jnp.allclose(logits, ref_logits, atol=1e-2, rtol=1e-2)
    assert jnp.array_equal(preds, ref_preds)
    assert jnp.array_equal(preds_eval, ref_preds)
    assert int(correct) == int(ref_correct)
    assert int(correct_eval) == int(ref_correct)

    print("KERNEL_OK")
</pallas_src>

<mosaic_0001>
module attributes {stable_mosaic.version = 11 : i64} {
  func.func @_nn_eval_kernel(%arg0: i32, %arg1: memref<8x32xbf16, #tpu.memory_space<vmem>>, %arg2: memref<32x128xbf16, #tpu.memory_space<vmem>>, %arg3: memref<1x128xf32, #tpu.memory_space<vmem>>, %arg4: memref<1x1x8xi32, #tpu.memory_space<vmem>>, %arg5: memref<8x128xf32, #tpu.memory_space<vmem>>, %arg6: memref<1x1x8xi32, #tpu.memory_space<vmem>>, %arg7: memref<1x1x1xi32, #tpu.memory_space<vmem>>) attributes {dimension_semantics = [#tpu.dimension_semantics<parallel>], iteration_bounds = array<i64: 1>, scalar_prefetch = 0 : i64, scratch_operands = 0 : i64, tpu.core_type = #tpu.core_type<tc>, window_params = [{transform_indices = @transform_0, window_bounds = array<i64: 8, 32>}, {pipeline_mode = #tpu.pipeline_mode<synchronous>, transform_indices = @transform_1, window_bounds = array<i64: 32, 128>}, {pipeline_mode = #tpu.pipeline_mode<synchronous>, transform_indices = @transform_2, window_bounds = array<i64: 1, 128>}, {transform_indices = @transform_3, window_bounds = array<i64: 1, 1, 8>}, {transform_indices = @transform_4, window_bounds = array<i64: 8, 128>}, {transform_indices = @transform_5, window_bounds = array<i64: 1, 1, 8>}, {transform_indices = @transform_6, window_bounds = array<i64: 1, 1, 1>}]} {
    %c0 = arith.constant 0 : index
    %c0_0 = arith.constant 0 : index
    %0 = vector.load %arg1[%c0, %c0_0] : memref<8x32xbf16, #tpu.memory_space<vmem>>, vector<8x32xbf16>
    %c0_1 = arith.constant 0 : index
    %c0_2 = arith.constant 0 : index
    %1 = vector.load %arg2[%c0_1, %c0_2] : memref<32x128xbf16, #tpu.memory_space<vmem>>, vector<32x128xbf16>
    %cst = arith.constant dense<0.000000e+00> : vector<8x128xf32>
    %2 = tpu.matmul %0, %1, %cst {dimension_numbers = #tpu.dot_dimension_numbers<[1], [0], [0], [1], [0, 0, 1, 1], [], []>} : vector<8x32xbf16>, vector<32x128xbf16>, vector<8x128xf32> -> vector<8x128xf32>
    %c0_3 = arith.constant 0 : index
    %c0_4 = arith.constant 0 : index
    %3 = vector.load %arg3[%c0_3, %c0_4] : memref<1x128xf32, #tpu.memory_space<vmem>>, vector<1x128xf32>
    %4 = vector.broadcast %3 : vector<1x128xf32> to vector<8x128xf32>
    %5 = arith.addf %2, %4 : vector<8x128xf32>
    %c0_5 = arith.constant 0 : index
    %c0_6 = arith.constant 0 : index
    %6 = vector.load %arg5[%c0_5, %c0_6] : memref<8x128xf32, #tpu.memory_space<vmem>>, vector<8x128xf32>
    tpu.vector_store %arg5[%c0_5, %c0_6], %5 {strides = array<i32>} : memref<8x128xf32, #tpu.memory_space<vmem>>, vector<8x128xf32>,
    %7 = tpu.iota {dimensions = array<i32: 1>} : vector<8x128xi32>
    %cst_7 = arith.constant dense<0xFF800000> : vector<8xf32>
    %8 = vector.multi_reduction <maximumf>, %5, %cst_7 [1] : vector<8x128xf32> to vector<8xf32>
    %9 = vector.shape_cast %8 : vector<8xf32> to vector<8x1xf32>
    %10 = vector.broadcast %9 : vector<8x1xf32> to vector<8x128xf32>
    %11 = arith.cmpf oeq, %5, %10 : vector<8x128xf32>
    %c128_i32 = arith.constant 128 : i32
    %12 = vector.broadcast %c128_i32 : i32 to vector<8x128xi32>
    %13 = arith.select %11, %7, %12 : vector<8x128xi1>, vector<8x128xi32>
    %cst_8 = arith.constant dense<2147483647> : vector<8xi32>
    %14 = vector.multi_reduction <minsi>, %13, %cst_8 [1] : vector<8x128xi32> to vector<8xi32>
    %15 = vector.shape_cast %14 : vector<8xi32> to vector<1x1x8xi32>
    %c0_9 = arith.constant 0 : index
    %c0_10 = arith.constant 0 : index
    %c0_11 = arith.constant 0 : index
    %16 = vector.load %arg6[%c0_9, %c0_10, %c0_11] : memref<1x1x8xi32, #tpu.memory_space<vmem>>, vector<1x1x8xi32>
    tpu.vector_store %arg6[%c0_9, %c0_10, %c0_11], %15 {strides = array<i32>} : memref<1x1x8xi32, #tpu.memory_space<vmem>>, vector<1x1x8xi32>,
    %c0_12 = arith.constant 0 : index
    %c0_13 = arith.constant 0 : index
    %c0_14 = arith.constant 0 : index
    %17 = vector.load %arg4[%c0_12, %c0_13, %c0_14] : memref<1x1x8xi32, #tpu.memory_space<vmem>>, vector<1x1x8xi32>
    %18 = arith.cmpi eq, %15, %17 : vector<1x1x8xi32>
    %19 = arith.extui %18 : vector<1x1x8xi1> to vector<1x1x8xi32>
    %cst_15 = arith.constant dense<0> : vector<1x1xi32>
    %20 = vector.multi_reduction <add>, %19, %cst_15 [2] : vector<1x1x8xi32> to vector<1x1xi32>
    %21 = vector.shape_cast %20 : vector<1x1xi32> to vector<1x1x1xi32>
    %c0_16 = arith.constant 0 : index
    %c0_17 = arith.constant 0 : index
    %c0_18 = arith.constant 0 : index
    %22 = vector.load %arg7[%c0_16, %c0_17, %c0_18] : memref<1x1x1xi32, #tpu.memory_space<vmem>>, vector<1x1x1xi32>
    tpu.vector_store %arg7[%c0_16, %c0_17, %c0_18], %21 {strides = array<i32>} : memref<1x1x1xi32, #tpu.memory_space<vmem>>, vector<1x1x1xi32>,
    return
  }
  func.func @transform_0(%arg0: i32) -> (i32, i32) {
    %c0_i32 = arith.constant 0 : i32
    %c0_i32_0 = arith.constant 0 : i32
    return %arg0, %c0_i32 : i32, i32
  }
  func.func @transform_1(%arg0: i32) -> (i32, i32) {
    %c0_i32 = arith.constant 0 : i32
    %c0_i32_0 = arith.constant 0 : i32
    %c0_i32_1 = arith.constant 0 : i32
    return %c0_i32, %c0_i32_0 : i32, i32
  }
  func.func @transform_2(%arg0: i32) -> (i32, i32) {
    %c0_i32 = arith.constant 0 : i32
    %c0_i32_0 = arith.constant 0 : i32
    %c0_i32_1 = arith.constant 0 : i32
    return %c0_i32, %c0_i32_0 : i32, i32
  }
  func.func @transform_3(%arg0: i32) -> (i32, i32, i32) {
    %c0_i32 = arith.constant 0 : i32
    %c0_i32_0 = arith.constant 0 : i32
    %c0_i32_1 = arith.constant 0 : i32
    return %arg0, %c0_i32, %c0_i32_0 : i32, i32, i32
  }
  func.func @transform_4(%arg0: i32) -> (i32, i32) {
    %c0_i32 = arith.constant 0 : i32
    %c0_i32_0 = arith.constant 0 : i32
    return %arg0, %c0_i32 : i32, i32
  }
  func.func @transform_5(%arg0: i32) -> (i32, i32, i32) {
    %c0_i32 = arith.constant 0 : i32
    %c0_i32_0 = arith.constant 0 : i32
    %c0_i32_1 = arith.constant 0 : i32
    return %arg0, %c0_i32, %c0_i32_0 : i32, i32, i32
  }
  func.func @transform_6(%arg0: i32) -> (i32, i32, i32) {
    %c0_i32 = arith.constant 0 : i32
    %c0_i32_0 = arith.constant 0 : i32
    %c0_i32_1 = arith.constant 0 : i32
    return %arg0, %c0_i32, %c0_i32_0 : i32, i32, i32
  }
}

</mosaic_0001>

<llo_original>
// kernel: tpu_custom_call.1
$region0: #{tpu_custom_call.1}
  #allocation0 [shape = 'u32[]', space=smem, size = 0x4, offset = 0x4, fixed_abs, tag = 'smem constant byte address 0x4 - core index']
  #allocation1 [shape = 'u32[144,128]{1,0:T(1,128)}', space=vmem, size = 0x12000, scoped, tag = 'internal scratch']
  %s0 = inlined_call_operand.hbm [shape: bf16[8,32], index: 0, kind: input, shape index: {}]
  %s1 = inlined_call_operand.hbm [shape: bf16[32,128], index: 1, kind: input, shape index: {}]
  %s2 = inlined_call_operand.vmem [shape: f32[1,128], index: 2, kind: input, shape index: {}]
  %s3 = inlined_call_operand.vmem [shape: s32[1,1,8], index: 3, kind: input, shape index: {}]
  %s4 = inlined_call_operand.hbm [shape: f32[8,128], index: 4, kind: output, shape index: {0}]
  %s5 = inlined_call_operand.hbm [shape: s32[1,1,8], index: 5, kind: output, shape index: {1}]
  %s6 = inlined_call_operand.hbm [shape: s32[1,1,1], index: 6, kind: output, shape index: {2}]
  %7 = xla_tuple %s4, %s5, %s6
  %s8 = sld [smem:[#allocation0]]
  $region50: #{tpu_custom_call.1} parent=0
    _
  %s10 = ssub.s32 1, %s8
  %s11 = scalar_select 0, %s10, %s8
  $region1: #{tpu_custom_call.1} parent=0
    #allocation2 [shape = 'u8[2048]{0}', space=vmem, size = 0x800, scoped, tag = 'input window, operand 0, single buffered']
    #allocation3 [shape = 's32[1]{0}', space=sflag, size = 0x4, scoped, tag = 'scoped memory for tpu_custom_call.1']
    #allocation4 [shape = 's32[1]{0}', space=sflag, size = 0x4, scoped, tag = 'scoped memory for tpu_custom_call.1']
    #allocation5 [shape = 'u8[8192]{0}', space=vmem, size = 0x2000, scoped, tag = 'input window, operand 1, single buffered']
    #allocation6 [shape = 's32[1]{0}', space=sflag, size = 0x4, scoped, tag = 'scoped memory for tpu_custom_call.1']
    #allocation7 [shape = 'u8[4096]{0}', space=vmem, size = 0x1000, scoped, tag = 'output window, operand 0, single buffered']
    #allocation8 [shape = 'u8[512]{0}', space=vmem, size = 0x400, scoped, tag = 'output window, operand 1, single buffered']
    #allocation9 [shape = 's32[1]{0}', space=sflag, size = 0x4, scoped, tag = 'scoped memory for tpu_custom_call.1']
    #allocation10 [shape = 'u8[512]{0}', space=vmem, size = 0x400, scoped, tag = 'output window, operand 2, single buffered']
    %12 = vsyncpa [#allocation3], 0
    %13 = vsyncpa [#allocation6], 0
    %14 = vsyncpa [#allocation4], 0
    %15 = vsyncpa [#allocation9], 0
    // Predicated region
    $region2: #{tpu_custom_call.1} parent=1 // pred_check
      _
    $region3: #{tpu_custom_call.1} parent=1 // pred_check_branch
      %17 = sbr.rel (0) target = $region5
    $region4: #{tpu_custom_call.1} parent=1 // pred_region
      %s19 = ssub.s32 64, 64
      %20 = vsyncadd [#allocation3], %s19
      %s22 = sshll.u32 [#allocation2], 4
      %s23 = int_to_ptr.vmem [resolvable:$true] %s22
      %25 = dma.hbm_to_vmem [thread:$0]  %s0, 64, %s23, [#allocation3]
    $region5: #{tpu_custom_call.1} parent=1 // pred_fallthru
      _
    // Predicated region
    $region6: #{tpu_custom_call.1} parent=1 // pred_check
      _
    $region7: #{tpu_custom_call.1} parent=1 // pred_check_branch
      %27 = sbr.rel (0) target = $region9
    $region8: #{tpu_custom_call.1} parent=1 // pred_region
      %s29 = ssub.s32 256, 256
      %30 = vsyncadd [#allocation6], %s29
      %s31 = sshll.u32 [#allocation5], 4
      %s32 = int_to_ptr.vmem [resolvable:$true] %s31
      %37 = dma.hbm_to_vmem [thread:$0]  %s1, 256, %s32, [#allocation6], 64, 64, 4
    $region9: #{tpu_custom_call.1} parent=1 // pred_fallthru
      _
    // Predicated region
    $region10: #{tpu_custom_call.1} parent=1 // pred_check
      _
    $region11: #{tpu_custom_call.1} parent=1 // pred_check_branch
      %39 = sbr.rel (0) target = $region13
    $region12: #{tpu_custom_call.1} parent=1 // pred_region
      _
    $region13: #{tpu_custom_call.1} parent=1 // pred_fallthru
      _
    // Predicated region
    $region14: #{tpu_custom_call.1} parent=1 // pred_check
      _
    $region15: #{tpu_custom_call.1} parent=1 // pred_check_branch
      %41 = sbr.rel (0) target = $region17
    $region16: #{tpu_custom_call.1} parent=1 // pred_region
      _
    $region17: #{tpu_custom_call.1} parent=1 // pred_fallthru
      _
    // Predicated region
    $region18: #{tpu_custom_call.1} parent=1 // pred_check
      _
    $region19: #{tpu_custom_call.1} parent=1 // pred_check_branch
      %43 = sbr.rel (0) target = $region21
    $region20: #{tpu_custom_call.1} parent=1 // pred_region
      %44 = dma.done [#allocation3], 64
    $region21: #{tpu_custom_call.1} parent=1 // pred_fallthru
      _
    // Predicated region
    $region22: #{tpu_custom_call.1} parent=1 // pred_check
      _
    $region23: #{tpu_custom_call.1} parent=1 // pred_check_branch
      %46 = sbr.rel (0) target = $region25
    $region24: #{tpu_custom_call.1} parent=1 // pred_region
      %47 = dma.done [#allocation6], 256
    $region25: #{tpu_custom_call.1} parent=1 // pred_fallthru
      _
    %v49 = vld [vmem:[#allocation2] sm:$0xf]
    %v50 = vld [vmem:[#allocation5] sm:$0xf]
    %v51 = vld [vmem:[#allocation5 + $0x4] sm:$0xf]
    %v52 = vld [vmem:[#allocation5 + $0x8] sm:$0xf]
    %v53 = vld [vmem:[#allocation5 + $0xc] sm:$0xf]
    %v54 = vld [vmem:[%s2] sm:$0x1]
    %v56 = vlaneseq
    %v57 = vshrl.u32 %v56, 7
    %v58 = vsub.s32 0, %v57
    %v59 = vrot.slane %v54, %v58
    %v65 = vunpack.c.l.b16 %v50
    %v66 = vunpack.c.l.b16 %v51
    %v67 = vunpack.c.l.b16 %v52
    %v68 = vunpack.c.l.b16 %v53
    %v69 = vpack.c.b16 %v66, %v65
    %v70 = vpack.c.b16 %v68, %v67
    %vm73 = vcmask 261120
    %v75 = vsel %vm73, %v49, 0
    %77 = vmatprep.subr.bf16.mxu0 0
    %78 = vmatpush1.bf16.msra.mxu0 %v69
    %79 = vmatprep.subr.bf16.mxu0 0
    %80 = vmatpush1.bf16.msra.mxu0 %v70
    %81 = vmatprep.subr.bf16.mxu0 0
    %82 = vmatpush1.bf16.msra.mxu0 0
    %83 = vmatprep.subr.bf16.mxu0 0
    %84 = vmatpush1.bf16.msra.mxu0 0
    %85 = vmatprep.subr.bf16.mxu0 0
    %86 = vmatpush1.bf16.msra.mxu0 0
    %87 = vmatprep.subr.bf16.mxu0 0
    %88 = vmatpush1.bf16.msra.mxu0 0
    %89 = vmatprep.subr.bf16.mxu0 0
    %90 = vmatpush1.bf16.msra.mxu0 0
    %91 = vmatprep.subr.bf16.mxu0 0
    %92 = vmatpush1.bf16.msra.mxu0 0
    %93 = vmatprep.subr.bf16.mxu0 0
    %94 = vmatpush1.bf16.msra.mxu0 0
    %95 = vmatprep.subr.bf16.mxu0 0
    %96 = vmatpush1.bf16.msra.mxu0 0
    %97 = vmatprep.subr.bf16.mxu0 0
    %98 = vmatpush1.bf16.msra.mxu0 0
    %99 = vmatprep.subr.bf16.mxu0 0
    %100 = vmatpush1.bf16.msra.mxu0 0
    %101 = vmatprep.subr.bf16.mxu0 0
    %102 = vmatpush1.bf16.msra.mxu0 0
    %103 = vmatprep.subr.bf16.mxu0 0
    %104 = vmatpush1.bf16.msra.mxu0 0
    %105 = vmatprep.subr.bf16.mxu0 0
    %106 = vmatpush1.bf16.msra.mxu0 0
    %107 = vmatprep.subr.bf16.mxu0 0
    %108 = vmatpush1.bf16.msra.mxu0 0
    %109 = vmatprep.mubr.bf16.mxu0 0
    %110 = vmatmul.mubr.bf16.gmra.mrb[0].mxu0 %v75
    %v111 = vpop.f32.mrb[0].mxu0
    %v112 = vadd.f32 %v59, %v111
    %v113 = vpop.f32.mrb[0].mxu0
    %v114 = vpop.f32.mrb[0].mxu0
    %v115 = vpop.f32.mrb[0].mxu0
    %116 = vdwg.mxu0
    %117 = vst [vmem:[#allocation7] sm:$0xff] %v112
    %v118 = vlaneseq
    %v119 = vand.u32 %v118, 127
    %120 = vmax.xlane.f32.xlu0 %v112
    %v121 = vpop.xlane.xlu0 %120
    %vm122 = vcmp.eq.f32.partialorder %v112, %v121
    %v123 = vsel %vm122, %v119, 128
    %v124 = vand.u32 %v123, 65535
    %v125 = vshra.s32 %v123, 16
    %v126 = vcvt.s32.f32 %v124
    %v127 = vcvt.s32.f32 %v125
    %128 = vmin.xlane.f32.xlu0 %v127
    %v129 = vpop.xlane.xlu0 %128
    %vm130 = vcmp.eq.f32.partialorder %v127, %v129
    %v131 = vsel %vm130, %v126, inf
    %132 = vmin.xlane.f32.xlu0 %v131
    %v133 = vpop.xlane.xlu0 %132
    %v134 = vcvt.f32.s32 %v133
    %v135 = vcvt.f32.s32 %v129
    %v136 = vshll.u32 %v135, 16
    %v137 = vadd.s32 %v136, %v134
    %v138 = vlaneseq
    %v139 = vshrl.u32 %v138, 7
    %v140 = vsub.s32 %v119, %v139
    %v141 = vrot.slane %v137, %v140
    %vm142 = vcmask 57344
    %143 = vst.msk [vmem:[#allocation8] sm:$0x1] %vm142, %v141
    %v144 = vld [vmem:[%s3] sm:$0x1]
    %v145 = vlaneseq
    %v146 = vshrl.u32 %v145, 7
    %v147 = vsub.s32 0, %v146
    %v148 = vrot.slane %v144, %v147
    %150 = vbcast.lane.b32.xlu0 %v148, 256
    %v151 = vpop.permute.xlu0 %150
    %vm152 = vcmp.eq.s32.totalorder %v137, %v151
    %v153 = vsel %vm152, 1, 0
    %vm154 = vcmask 7168
    %v155 = vsel %vm154, %v153, 0
    %v156 = vrot.slane %v155, 4
    %v157 = vadd.s32 %v155, %v156
    %v158 = vrot.slane %v157, 2
    %v159 = vadd.s32 %v157, %v158
    %v160 = vrot.slane %v159, 1
    %v161 = vadd.s32 %v159, %v160
    %vm162 = vcmask 0
    %163 = vst.msk [vmem:[#allocation10] sm:$0x1] %vm162, %v161
    // Predicated region
    $region26: #{tpu_custom_call.1} parent=1 // pred_check
      _
    $region27: #{tpu_custom_call.1} parent=1 // pred_check_branch
      %165 = sbr.rel (0) target = $region29
    $region28: #{tpu_custom_call.1} parent=1 // pred_region
      %s167 = ssub.s32 128, 128
      %168 = vsyncadd [#allocation4], %s167
      %s170 = sshll.u32 [#allocation7], 4
      %s171 = int_to_ptr.vmem [resolvable:$true] %s170
      %173 = dma.vmem_to_hbm [thread:$0]  %s171, 128, %s4, [#allocation4]
    $region29: #{tpu_custom_call.1} parent=1 // pred_fallthru
      _
    // Predicated region
    $region30: #{tpu_custom_call.1} parent=1 // pred_check
      _
    $region31: #{tpu_custom_call.1} parent=1 // pred_check_branch
      %175 = sbr.rel (0) target = $region33
    $region32: #{tpu_custom_call.1} parent=1 // pred_region
      %s177 = ssub.s32 16, 16
      %178 = vsyncadd [#allocation9], %s177
      %s180 = sshll.u32 [#allocation8], 4
      %s181 = int_to_ptr.vmem [resolvable:$true] %s180
      %183 = dma.vmem_to_hbm [thread:$0]  %s181, 16, %s5, [#allocation9]
    $region33: #{tpu_custom_call.1} parent=1 // pred_fallthru
      _
    // Predicated region
    $region34: #{tpu_custom_call.1} parent=1 // pred_check
      _
    $region35: #{tpu_custom_call.1} parent=1 // pred_check_branch
      %185 = sbr.rel (0) target = $region37
    $region36: #{tpu_custom_call.1} parent=1 // pred_region
      %s187 = ssub.s32 16, 16
      %188 = vsyncadd [#allocation9], %s187
      %s190 = sshll.u32 [#allocation10], 4
      %s191 = int_to_ptr.vmem [resolvable:$true] %s190
      %193 = dma.vmem_to_hbm [thread:$0]  %s191, 16, %s6, [#allocation9]
    $region37: #{tpu_custom_call.1} parent=1 // pred_fallthru
      _
    // Predicated region
    $region38: #{tpu_custom_call.1} parent=1 // pred_check
      _
    $region39: #{tpu_custom_call.1} parent=1 // pred_check_branch
      %195 = sbr.rel (0) target = $region41
    $region40: #{tpu_custom_call.1} parent=1 // pred_region
      %196 = dma.done [#allocation4], 128
    $region41: #{tpu_custom_call.1} parent=1 // pred_fallthru
      _
    // Predicated region
    $region42: #{tpu_custom_call.1} parent=1 // pred_check
      _
    $region43: #{tpu_custom_call.1} parent=1 // pred_check_branch
      %198 = sbr.rel (0) target = $region45
    $region44: #{tpu_custom_call.1} parent=1 // pred_region
      %199 = dma.done [#allocation9], 16
    $region45: #{tpu_custom_call.1} parent=1 // pred_fallthru
      _
    // Predicated region
    $region46: #{tpu_custom_call.1} parent=1 // pred_check
      _
    $region47: #{tpu_custom_call.1} parent=1 // pred_check_branch
      %201 = sbr.rel (0) target = $region49
    $region48: #{tpu_custom_call.1} parent=1 // pred_region
      %202 = dma.done [#allocation9], 16
    $region49: #{tpu_custom_call.1} parent=1 // pred_fallthru
      _
    %203 = vsyncpa [#allocation3], 1
    %204 = vsyncpa [#allocation6], 1
    %205 = vsyncpa [#allocation4], 1
    %206 = vsyncpa [#allocation9], 1

</llo_original>
